<compile_context>
chip_gen: v7x
topology: tpu7x:2x2x1
jax: 0.10.0
libtpu: 0.0.40
codegen_flags: <defaults>
</compile_context>

<pallas_src>
import jax
import jax.numpy as jnp
from jax.experimental import pallas as pl
from jax.experimental.pallas import tpu as pltpu

_LANE = 128


def hypergraph_net_kernel(x_ref, h_ref, w1_ref, b1_ref, w2_ref, b2_ref,
                          pool_ref, fcw_ref, fcb_ref, out_ref):
    # H arrives as bf16 (exact 0/1); cast once to f32 for degree math and the
    # folded-normalization copy (keeps elementwise math in f32 on v5e too).
    Hf = h_ref[...].astype(jnp.float32)                      # (N, M)

    # Node degree D (row-sum) and hyperedge degree B (col-sum), inverted, inf -> 0.
    d = jnp.sum(Hf, axis=1, keepdims=True)                   # (N, 1)
    d_inv = jnp.where(d > 0.0, 1.0 / d, 0.0)
    bdeg = jnp.sum(Hf, axis=0, keepdims=True)                # (1, M)
    b_inv = jnp.where(bdeg > 0.0, 1.0 / bdeg, 0.0)

    # Fold both normalizations into H once: H_norm = diag(d_inv) @ H @ diag(b_inv).
    # Computed once, reused by both conv layers.
    H_norm = Hf * d_inv * b_inv                              # (N, M)

    def hypergraph_conv(x, w, bias):
        # out = D^{-1} H B^{-1} H^T (x @ w) + bias == H_norm @ (H^T @ (x @ w)) + bias
        xw = jnp.dot(x, w, preferred_element_type=jnp.float32)            # (N, C)
        # H^T @ xw without materializing a transpose: contract H's node axis (0).
        he = jax.lax.dot_general(Hf, xw, (((0,), (0,)), ((), ())),
                                 preferred_element_type=jnp.float32)      # (M, C)
        return jnp.dot(H_norm, he, preferred_element_type=jnp.float32) + bias

    x = x_ref[...]
    h1 = jnp.maximum(hypergraph_conv(x, w1_ref[...], b1_ref[...]), 0.0)
    # TODO(synk): nn.Dropout is identity in eval mode; training-mode stochastic
    # dropout (pltpu.prng_*) not implemented.
    h2 = jnp.maximum(hypergraph_conv(h1, w2_ref[...], b2_ref[...]), 0.0)

    # global_mean_pool(x, batch): pool_ref[g, i] = 1/|graph g| if batch[i] == g else 0.
    pooled = jnp.dot(pool_ref[...], h2, preferred_element_type=jnp.float32)       # (G, hidden)
    # fc output dim is zero-padded to 128 lanes -> unmasked, lane-dense store.
    out_ref[...] = (jnp.dot(pooled, fcw_ref[...], preferred_element_type=jnp.float32)
                    + fcb_ref[...])                                                # (G, out_pad)


def _full_spec(shape):
    # whole-array block resident in VMEM (single grid point)
    return pl.BlockSpec(shape, lambda i: (0,) * len(shape))


def hypergraph_net_forward(x, H, w1, b1, w2, b2, pool, fc_w_t, fc_b):
    N, c_in = x.shape
    M = H.shape[1]
    G = pool.shape[0]
    hid = w1.shape[1]
    out_c = fc_w_t.shape[1]

    # bf16 incidence matrix: exact for 0/1, halves HBM/VMEM bytes of the dominant operand.
    Hb = H.astype(jnp.bfloat16)

    # Zero-pad the fc output dimension up to a full 128-lane width.
    out_pad = max(_LANE, ((out_c + _LANE - 1) // _LANE) * _LANE)
    fc_w_pad = jnp.zeros((hid, out_pad), jnp.float32).at[:, :out_c].set(fc_w_t)
    fc_b_pad = jnp.zeros((1, out_pad), jnp.float32).at[:, :out_c].set(fc_b)

    args = (x, Hb, w1, b1, w2, b2, pool, fc_w_pad, fc_b_pad)
    in_specs = [_full_spec(a.shape) for a in args]

    flops = 2 * (N * c_in * hid          # x @ w1
                 + 2 * N * M * hid       # he1 + nd1
                 + N * hid * hid         # h1 @ w2
                 + 2 * N * M * hid       # he2 + nd2
                 + G * N * hid           # pooling matmul
                 + G * hid * out_pad)    # fc
    bytes_accessed = int(sum(a.size * a.dtype.itemsize for a in args) + G * out_pad * 4)

    out = pl.pallas_call(
        hypergraph_net_kernel,
        out_shape=jax.ShapeDtypeStruct((G, out_pad), jnp.float32),
        grid=(1,),
        in_specs=in_specs,
        out_specs=_full_spec((G, out_pad)),
        compiler_params=pltpu.CompilerParams(
            dimension_semantics=("arbitrary",),
            vmem_limit_bytes=32 * 1024 * 1024),
        cost_estimate=pl.CostEstimate(flops=flops, transcendentals=0,
                                      bytes_accessed=bytes_accessed),
    )(*args)

    # drop the lane padding, then mimic `.view(-1)`
    return out[:, :out_c].reshape(-1)


def ref_forward(x, H, w1, b1, w2, b2, pool, fc_w_t, fc_b):
    d = H.sum(axis=1, keepdims=True)
    d_inv = jnp.where(d > 0, 1.0 / d, 0.0)
    bdeg = H.sum(axis=0, keepdims=True).T
    b_inv = jnp.where(bdeg > 0, 1.0 / bdeg, 0.0)

    def conv(x, w, bias):
        xw = x @ w
        he = (H.T @ xw) * b_inv
        return (H @ he) * d_inv + bias

    h1 = jnp.maximum(conv(x, w1, b1), 0.0)
    h2 = jnp.maximum(conv(h1, w2, b2), 0.0)
    pooled = pool @ h2
    return (pooled @ fc_w_t + fc_b).reshape(-1)


if __name__ == "__main__":
    # small, deterministic problem
    N = 16            # nodes
    M = 8             # hyperedges
    C_IN = 8          # in_channels
    HID = 32          # hidden_channels
    OUT = 4           # out_channels
    G = 2             # graphs in the batch

    key = jax.random.PRNGKey(0)
    k_x, k_w1, k_b1, k_w2, k_b2, k_fw, k_fb = jax.random.split(key, 7)

    # node features
    x = jax.random.normal(k_x, (N, C_IN), dtype=jnp.float32)

    # deterministic edge_index: each node belongs to two hyperedges
    nodes = jnp.arange(N, dtype=jnp.int32)
    edge_index = jnp.stack([
        jnp.concatenate([nodes, nodes]),
        jnp.concatenate([nodes % M, (nodes + 3) % M]),
    ])  # (2, 2N)

    # dense incidence matrix H (N, M)
    H = jnp.zeros((N, M), dtype=jnp.float32).at[edge_index[0], edge_index[1]].set(1.0)

    # batch assignment -> mean-pooling matrix (G, N)
    batch = jnp.concatenate([jnp.zeros(N // 2, jnp.int32), jnp.ones(N - N // 2, jnp.int32)])
    onehot = jax.nn.one_hot(batch, G, dtype=jnp.float32).T          # (G, N)
    counts = jnp.maximum(onehot.sum(axis=1, keepdims=True), 1.0)
    pool = onehot / counts

    # parameters (glorot-ish deterministic init)
    def glorot(k, shape):
        fan_in, fan_out = shape[0], shape[1]
        lim = (6.0 / (fan_in + fan_out)) ** 0.5
        return jax.random.uniform(k, shape, jnp.float32, -lim, lim)

    w1 = glorot(k_w1, (C_IN, HID))
    b1 = jax.random.normal(k_b1, (1, HID), dtype=jnp.float32) * 0.01
    w2 = glorot(k_w2, (HID, HID))
    b2 = jax.random.normal(k_b2, (1, HID), dtype=jnp.float32) * 0.01
    fc_w_t = glorot(k_fw, (HID, OUT))                               # Linear weight, pre-transposed
    fc_b = jax.random.normal(k_fb, (1, OUT), dtype=jnp.float32) * 0.01

    out = hypergraph_net_forward(x, H, w1, b1, w2, b2, pool, fc_w_t, fc_b)
    out = jax.block_until_ready(out)

    ref = ref_forward(x, H, w1, b1, w2, b2, pool, fc_w_t, fc_b)
    assert out.shape == (G * OUT,)
    assert jnp.allclose(out, ref, atol=1e-4, rtol=1e-4), (out, ref)

    print("KERNEL_OK")
</pallas_src>

<mosaic_0001>
module attributes {stable_mosaic.version = 11 : i64} {
  func.func @hypergraph_net_kernel(%arg0: i32, %arg1: memref<16x8xf32, #tpu.memory_space<vmem>>, %arg2: memref<16x8xbf16, #tpu.memory_space<vmem>>, %arg3: memref<8x32xf32, #tpu.memory_space<vmem>>, %arg4: memref<1x32xf32, #tpu.memory_space<vmem>>, %arg5: memref<32x32xf32, #tpu.memory_space<vmem>>, %arg6: memref<1x32xf32, #tpu.memory_space<vmem>>, %arg7: memref<2x16xf32, #tpu.memory_space<vmem>>, %arg8: memref<32x128xf32, #tpu.memory_space<vmem>>, %arg9: memref<1x128xf32, #tpu.memory_space<vmem>>, %arg10: memref<2x128xf32, #tpu.memory_space<vmem>>) attributes {dimension_semantics = [#tpu.dimension_semantics<arbitrary>], iteration_bounds = array<i64: 1>, scalar_prefetch = 0 : i64, scratch_operands = 0 : i64, tpu.core_type = #tpu.core_type<tc>, window_params = [{pipeline_mode = #tpu.pipeline_mode<synchronous>, transform_indices = @transform_0, window_bounds = array<i64: 16, 8>}, {pipeline_mode = #tpu.pipeline_mode<synchronous>, transform_indices = @transform_1, window_bounds = array<i64: 16, 8>}, {pipeline_mode = #tpu.pipeline_mode<synchronous>, transform_indices = @transform_2, window_bounds = array<i64: 8, 32>}, {pipeline_mode = #tpu.pipeline_mode<synchronous>, transform_indices = @transform_3, window_bounds = array<i64: 1, 32>}, {pipeline_mode = #tpu.pipeline_mode<synchronous>, transform_indices = @transform_4, window_bounds = array<i64: 32, 32>}, {pipeline_mode = #tpu.pipeline_mode<synchronous>, transform_indices = @transform_5, window_bounds = array<i64: 1, 32>}, {pipeline_mode = #tpu.pipeline_mode<synchronous>, transform_indices = @transform_6, window_bounds = array<i64: 2, 16>}, {pipeline_mode = #tpu.pipeline_mode<synchronous>, transform_indices = @transform_7, window_bounds = array<i64: 32, 128>}, {pipeline_mode = #tpu.pipeline_mode<synchronous>, transform_indices = @transform_8, window_bounds = array<i64: 1, 128>}, {pipeline_mode = #tpu.pipeline_mode<synchronous>, transform_indices = @transform_9, window_bounds = array<i64: 2, 128>}]} {
    %c0 = arith.constant 0 : index
    %c0_0 = arith.constant 0 : index
    %0 = vector.load %arg2[%c0, %c0_0] : memref<16x8xbf16, #tpu.memory_space<vmem>>, vector<16x8xbf16>
    %1 = arith.extf %0 : vector<16x8xbf16> to vector<16x8xf32>
    %cst = arith.constant dense<0.000000e+00> : vector<16xf32>
    %2 = vector.multi_reduction <add>, %1, %cst [1] : vector<16x8xf32> to vector<16xf32>
    %3 = vector.shape_cast %2 : vector<16xf32> to vector<16x1xf32>
    %cst_1 = arith.constant 0.000000e+00 : f32
    %4 = vector.broadcast %cst_1 : f32 to vector<16x1xf32>
    %5 = arith.cmpf ogt, %3, %4 : vector<16x1xf32>
    %cst_2 = arith.constant 1.000000e+00 : f32
    %6 = vector.broadcast %cst_2 : f32 to vector<16x1xf32>
    %7 = arith.divf %6, %3 : vector<16x1xf32>
    %cst_3 = arith.constant 0.000000e+00 : f32
    %8 = vector.broadcast %cst_3 : f32 to vector<16x1xf32>
    %9 = arith.select %5, %7, %8 : vector<16x1xi1>, vector<16x1xf32>
    %cst_4 = arith.constant dense<0.000000e+00> : vector<8xf32>
    %10 = vector.multi_reduction <add>, %1, %cst_4 [0] : vector<16x8xf32> to vector<8xf32>
    %11 = vector.shape_cast %10 : vector<8xf32> to vector<1x8xf32>
    %cst_5 = arith.constant 0.000000e+00 : f32
    %12 = vector.broadcast %cst_5 : f32 to vector<1x8xf32>
    %13 = arith.cmpf ogt, %11, %12 : vector<1x8xf32>
    %cst_6 = arith.constant 1.000000e+00 : f32
    %14 = vector.broadcast %cst_6 : f32 to vector<1x8xf32>
    %15 = arith.divf %14, %11 : vector<1x8xf32>
    %cst_7 = arith.constant 0.000000e+00 : f32
    %16 = vector.broadcast %cst_7 : f32 to vector<1x8xf32>
    %17 = arith.select %13, %15, %16 : vector<1x8xi1>, vector<1x8xf32>
    %18 = vector.broadcast %9 : vector<16x1xf32> to vector<16x8xf32>
    %19 = arith.mulf %1, %18 : vector<16x8xf32>
    %20 = vector.broadcast %17 : vector<1x8xf32> to vector<16x8xf32>
    %21 = arith.mulf %19, %20 : vector<16x8xf32>
    %c0_8 = arith.constant 0 : index
    %c0_9 = arith.constant 0 : index
    %22 = vector.load %arg1[%c0_8, %c0_9] : memref<16x8xf32, #tpu.memory_space<vmem>>, vector<16x8xf32>
    %c0_10 = arith.constant 0 : index
    %c0_11 = arith.constant 0 : index
    %23 = vector.load %arg3[%c0_10, %c0_11] : memref<8x32xf32, #tpu.memory_space<vmem>>, vector<8x32xf32>
    %c0_12 = arith.constant 0 : index
    %c0_13 = arith.constant 0 : index
    %24 = vector.load %arg4[%c0_12, %c0_13] : memref<1x32xf32, #tpu.memory_space<vmem>>, vector<1x32xf32>
    %cst_14 = arith.constant dense<0.000000e+00> : vector<16x32xf32>
    %25 = tpu.matmul %22, %23, %cst_14 {dimension_numbers = #tpu.dot_dimension_numbers<[1], [0], [0], [1], [0, 0, 1, 1], [], []>} : vector<16x8xf32>, vector<8x32xf32>, vector<16x32xf32> -> vector<16x32xf32>
    %cst_15 = arith.constant dense<0.000000e+00> : vector<8x32xf32>
    %26 = tpu.matmul %1, %25, %cst_15 {dimension_numbers = #tpu.dot_dimension_numbers<[0], [0], [1], [1], [0, 1, 1, 1], [], []>} : vector<16x8xf32>, vector<16x32xf32>, vector<8x32xf32> -> vector<8x32xf32>
    %cst_16 = arith.constant dense<0.000000e+00> : vector<16x32xf32>
    %27 = tpu.matmul %21, %26, %cst_16 {dimension_numbers = #tpu.dot_dimension_numbers<[1], [0], [0], [1], [0, 0, 1, 1], [], []>} : vector<16x8xf32>, vector<8x32xf32>, vector<16x32xf32> -> vector<16x32xf32>
    %28 = vector.broadcast %24 : vector<1x32xf32> to vector<16x32xf32>
    %29 = arith.addf %27, %28 : vector<16x32xf32>
    %cst_17 = arith.constant 0.000000e+00 : f32
    %30 = vector.broadcast %cst_17 : f32 to vector<16x32xf32>
    %31 = arith.maximumf %29, %30 : vector<16x32xf32>
    %c0_18 = arith.constant 0 : index
    %c0_19 = arith.constant 0 : index
    %32 = vector.load %arg5[%c0_18, %c0_19] : memref<32x32xf32, #tpu.memory_space<vmem>>, vector<32x32xf32>
    %c0_20 = arith.constant 0 : index
    %c0_21 = arith.constant 0 : index
    %33 = vector.load %arg6[%c0_20, %c0_21] : memref<1x32xf32, #tpu.memory_space<vmem>>, vector<1x32xf32>
    %cst_22 = arith.constant dense<0.000000e+00> : vector<16x32xf32>
    %34 = tpu.matmul %31, %32, %cst_22 {dimension_numbers = #tpu.dot_dimension_numbers<[1], [0], [0], [1], [0, 0, 1, 1], [], []>} : vector<16x32xf32>, vector<32x32xf32>, vector<16x32xf32> -> vector<16x32xf32>
    %cst_23 = arith.constant dense<0.000000e+00> : vector<8x32xf32>
    %35 = tpu.matmul %1, %34, %cst_23 {dimension_numbers = #tpu.dot_dimension_numbers<[0], [0], [1], [1], [0, 1, 1, 1], [], []>} : vector<16x8xf32>, vector<16x32xf32>, vector<8x32xf32> -> vector<8x32xf32>
    %cst_24 = arith.constant dense<0.000000e+00> : vector<16x32xf32>
    %36 = tpu.matmul %21, %35, %cst_24 {dimension_numbers = #tpu.dot_dimension_numbers<[1], [0], [0], [1], [0, 0, 1, 1], [], []>} : vector<16x8xf32>, vector<8x32xf32>, vector<16x32xf32> -> vector<16x32xf32>
    %37 = vector.broadcast %33 : vector<1x32xf32> to vector<16x32xf32>
    %38 = arith.addf %36, %37 : vector<16x32xf32>
    %cst_25 = arith.constant 0.000000e+00 : f32
    %39 = vector.broadcast %cst_25 : f32 to vector<16x32xf32>
    %40 = arith.maximumf %38, %39 : vector<16x32xf32>
    %c0_26 = arith.constant 0 : index
    %c0_27 = arith.constant 0 : index
    %41 = vector.load %arg7[%c0_26, %c0_27] : memref<2x16xf32, #tpu.memory_space<vmem>>, vector<2x16xf32>
    %cst_28 = arith.constant dense<0.000000e+00> : vector<2x32xf32>
    %42 = tpu.matmul %41, %40, %cst_28 {dimension_numbers = #tpu.dot_dimension_numbers<[1], [0], [0], [1], [0, 0, 1, 1], [], []>} : vector<2x16xf32>, vector<16x32xf32>, vector<2x32xf32> -> vector<2x32xf32>
    %c0_29 = arith.constant 0 : index
    %c0_30 = arith.constant 0 : index
    %43 = vector.load %arg8[%c0_29, %c0_30] : memref<32x128xf32, #tpu.memory_space<vmem>>, vector<32x128xf32>
    %cst_31 = arith.constant dense<0.000000e+00> : vector<2x128xf32>
    %44 = tpu.matmul %42, %43, %cst_31 {dimension_numbers = #tpu.dot_dimension_numbers<[1], [0], [0], [1], [0, 0, 1, 1], [], []>} : vector<2x32xf32>, vector<32x128xf32>, vector<2x128xf32> -> vector<2x128xf32>
    %c0_32 = arith.constant 0 : index
    %c0_33 = arith.constant 0 : index
    %45 = vector.load %arg9[%c0_32, %c0_33] : memref<1x128xf32, #tpu.memory_space<vmem>>, vector<1x128xf32>
    %46 = vector.broadcast %45 : vector<1x128xf32> to vector<2x128xf32>
    %47 = arith.addf %44, %46 : vector<2x128xf32>
    %c0_34 = arith.constant 0 : index
    %c0_35 = arith.constant 0 : index
    %48 = vector.load %arg10[%c0_34, %c0_35] : memref<2x128xf32, #tpu.memory_space<vmem>>, vector<2x128xf32>
    tpu.vector_store %arg10[%c0_34, %c0_35], %47 {strides = array<i32>} : memref<2x128xf32, #tpu.memory_space<vmem>>, vector<2x128xf32>,
    return
  }
  func.func @transform_0(%arg0: i32) -> (i32, i32) {
    %c0_i32 = arith.constant 0 : i32
    %c0_i32_0 = arith.constant 0 : i32
    %c0_i32_1 = arith.constant 0 : i32
    return %c0_i32, %c0_i32_0 : i32, i32
  }
  func.func @transform_1(%arg0: i32) -> (i32, i32) {
    %c0_i32 = arith.constant 0 : i32
    %c0_i32_0 = arith.constant 0 : i32
    %c0_i32_1 = arith.constant 0 : i32
    return %c0_i32, %c0_i32_0 : i32, i32
  }
  func.func @transform_2(%arg0: i32) -> (i32, i32) {
    %c0_i32 = arith.constant 0 : i32
    %c0_i32_0 = arith.constant 0 : i32
    %c0_i32_1 = arith.constant 0 : i32
    return %c0_i32, %c0_i32_0 : i32, i32
  }
  func.func @transform_3(%arg0: i32) -> (i32, i32) {
    %c0_i32 = arith.constant 0 : i32
    %c0_i32_0 = arith.constant 0 : i32
    %c0_i32_1 = arith.constant 0 : i32
    return %c0_i32, %c0_i32_0 : i32, i32
  }
  func.func @transform_4(%arg0: i32) -> (i32, i32) {
    %c0_i32 = arith.constant 0 : i32
    %c0_i32_0 = arith.constant 0 : i32
    %c0_i32_1 = arith.constant 0 : i32
    return %c0_i32, %c0_i32_0 : i32, i32
  }
  func.func @transform_5(%arg0: i32) -> (i32, i32) {
    %c0_i32 = arith.constant 0 : i32
    %c0_i32_0 = arith.constant 0 : i32
    %c0_i32_1 = arith.constant 0 : i32
    return %c0_i32, %c0_i32_0 : i32, i32
  }
  func.func @transform_6(%arg0: i32) -> (i32, i32) {
    %c0_i32 = arith.constant 0 : i32
    %c0_i32_0 = arith.constant 0 : i32
    %c0_i32_1 = arith.constant 0 : i32
    return %c0_i32, %c0_i32_0 : i32, i32
  }
  func.func @transform_7(%arg0: i32) -> (i32, i32) {
    %c0_i32 = arith.constant 0 : i32
    %c0_i32_0 = arith.constant 0 : i32
    %c0_i32_1 = arith.constant 0 : i32
    return %c0_i32, %c0_i32_0 : i32, i32
  }
  func.func @transform_8(%arg0: i32) -> (i32, i32) {
    %c0_i32 = arith.constant 0 : i32
    %c0_i32_0 = arith.constant 0 : i32
    %c0_i32_1 = arith.constant 0 : i32
    return %c0_i32, %c0_i32_0 : i32, i32
  }
  func.func @transform_9(%arg0: i32) -> (i32, i32) {
    %c0_i32 = arith.constant 0 : i32
    %c0_i32_0 = arith.constant 0 : i32
    %c0_i32_1 = arith.constant 0 : i32
    return %c0_i32, %c0_i32_0 : i32, i32
  }
}

</mosaic_0001>

<llo_original>
// kernel: tpu_custom_call.1
$region0: #{tpu_custom_call.1}
  #allocation0 [shape = 'u32[]', space=smem, size = 0x4, offset = 0x4, fixed_abs, tag = 'smem constant byte address 0x4 - core index']
  #allocation1 [shape = 'u32[144,128]{1,0:T(1,128)}', space=vmem, size = 0x12000, scoped, tag = 'internal scratch']
  %s0 = inlined_call_operand.vmem [shape: f32[16,8], index: 0, kind: input, shape index: {}]
  %s1 = inlined_call_operand.vmem [shape: bf16[16,8], index: 1, kind: input, shape index: {}]
  %s2 = inlined_call_operand.vmem [shape: f32[8,32], index: 2, kind: input, shape index: {}]
  %s3 = inlined_call_operand.vmem [shape: f32[1,32], index: 3, kind: input, shape index: {}]
  %s4 = inlined_call_operand.vmem [shape: f32[32,32], index: 4, kind: input, shape index: {}]
  %s5 = inlined_call_operand.vmem [shape: f32[1,32], index: 5, kind: input, shape index: {}]
  %s6 = inlined_call_operand.vmem [shape: f32[2,16], index: 6, kind: input, shape index: {}]
  %s7 = inlined_call_operand.hbm [shape: f32[32,128], index: 7, kind: input, shape index: {}]
  %s8 = inlined_call_operand.vmem [shape: f32[1,128], index: 8, kind: input, shape index: {}]
  %s9 = inlined_call_operand.hbm [shape: f32[2,128], index: 9, kind: output, shape index: {}]
  %s10 = sld [smem:[#allocation0]]
  $region50: #{tpu_custom_call.1} parent=0
    _
  %s12 = ssub.s32 1, %s10
  %s13 = scalar_select 0, %s12, %s10
  $region1: #{tpu_custom_call.1} parent=0
    #allocation2 [shape = 'u8[16384]{0}', space=vmem, size = 0x4000, scoped, tag = 'input window, operand 7, single buffered']
    #allocation3 [shape = 's32[1]{0}', space=sflag, size = 0x4, scoped, tag = 'scoped memory for tpu_custom_call.1']
    #allocation4 [shape = 's32[1]{0}', space=sflag, size = 0x4, scoped, tag = 'scoped memory for tpu_custom_call.1']
    #allocation5 [shape = 'u8[1024]{0}', space=vmem, size = 0x400, scoped, tag = 'output window, operand 0, single buffered']
    %14 = vsyncpa [#allocation3], 0
    %15 = vsyncpa [#allocation4], 0
    // Predicated region
    $region2: #{tpu_custom_call.1} parent=1 // pred_check
      _
    $region3: #{tpu_custom_call.1} parent=1 // pred_check_branch
      %17 = sbr.rel (0) target = $region5
    $region4: #{tpu_custom_call.1} parent=1 // pred_region
      _
    $region5: #{tpu_custom_call.1} parent=1 // pred_fallthru
      _
    // Predicated region
    $region6: #{tpu_custom_call.1} parent=1 // pred_check
      _
    $region7: #{tpu_custom_call.1} parent=1 // pred_check_branch
      %19 = sbr.rel (0) target = $region9
    $region8: #{tpu_custom_call.1} parent=1 // pred_region
      _
    $region9: #{tpu_custom_call.1} parent=1 // pred_fallthru
      _
    // Predicated region
    $region10: #{tpu_custom_call.1} parent=1 // pred_check
      _
    $region11: #{tpu_custom_call.1} parent=1 // pred_check_branch
      %21 = sbr.rel (0) target = $region13
    $region12: #{tpu_custom_call.1} parent=1 // pred_region
      _
    $region13: #{tpu_custom_call.1} parent=1 // pred_fallthru
      _
    // Predicated region
    $region14: #{tpu_custom_call.1} parent=1 // pred_check
      _
    $region15: #{tpu_custom_call.1} parent=1 // pred_check_branch
      %23 = sbr.rel (0) target = $region17
    $region16: #{tpu_custom_call.1} parent=1 // pred_region
      _
    $region17: #{tpu_custom_call.1} parent=1 // pred_fallthru
      _
    // Predicated region
    $region18: #{tpu_custom_call.1} parent=1 // pred_check
      _
    $region19: #{tpu_custom_call.1} parent=1 // pred_check_branch
      %25 = sbr.rel (0) target = $region21
    $region20: #{tpu_custom_call.1} parent=1 // pred_region
      _
    $region21: #{tpu_custom_call.1} parent=1 // pred_fallthru
      _
    // Predicated region
    $region22: #{tpu_custom_call.1} parent=1 // pred_check
      _
    $region23: #{tpu_custom_call.1} parent=1 // pred_check_branch
      %27 = sbr.rel (0) target = $region25
    $region24: #{tpu_custom_call.1} parent=1 // pred_region
      _
    $region25: #{tpu_custom_call.1} parent=1 // pred_fallthru
      _
    // Predicated region
    $region26: #{tpu_custom_call.1} parent=1 // pred_check
      _
    $region27: #{tpu_custom_call.1} parent=1 // pred_check_branch
      %29 = sbr.rel (0) target = $region29
    $region28: #{tpu_custom_call.1} parent=1 // pred_region
      _
    $region29: #{tpu_custom_call.1} parent=1 // pred_fallthru
      _
    // Predicated region
    $region30: #{tpu_custom_call.1} parent=1 // pred_check
      _
    $region31: #{tpu_custom_call.1} parent=1 // pred_check_branch
      %31 = sbr.rel (0) target = $region33
    $region32: #{tpu_custom_call.1} parent=1 // pred_region
      %s33 = ssub.s32 512, 512
      %34 = vsyncadd [#allocation3], %s33
      %s35 = sshll.u32 [#allocation2], 4
      %s36 = int_to_ptr.vmem [resolvable:$true] %s35
      %41 = dma.hbm_to_vmem [thread:$0]  %s7, 512, %s36, [#allocation3], 128, 128, 8
    $region33: #{tpu_custom_call.1} parent=1 // pred_fallthru
      _
    // Predicated region
    $region34: #{tpu_custom_call.1} parent=1 // pred_check
      _
    $region35: #{tpu_custom_call.1} parent=1 // pred_check_branch
      %43 = sbr.rel (0) target = $region37
    $region36: #{tpu_custom_call.1} parent=1 // pred_region
      _
    $region37: #{tpu_custom_call.1} parent=1 // pred_fallthru
      _
    // Predicated region
    $region38: #{tpu_custom_call.1} parent=1 // pred_check
      _
    $region39: #{tpu_custom_call.1} parent=1 // pred_check_branch
      %45 = sbr.rel (0) target = $region41
    $region40: #{tpu_custom_call.1} parent=1 // pred_region
      %46 = dma.done [#allocation3], 512
    $region41: #{tpu_custom_call.1} parent=1 // pred_fallthru
      _
    %v47 = vld [vmem:[%s1] sm:$0xf]
    %v48 = vld [vmem:[%s1 + $0x4] sm:$0xf]
    %v49 = vunpack.c.l.bf16 %v47
    %v50 = vunpack.c.l.bf16 %v48
    %vm51 = vcmask 64512
    %v52 = vsel %vm51, %v49, 0.0
    %53 = vadd.xlane.f32.xlu0 %v52
    %v54 = vpop.xlane.xlu0 %53
    %v55 = vsel %vm51, %v50, 0.0
    %56 = vadd.xlane.f32.xlu0 %v55
    %v57 = vpop.xlane.xlu0 %56
    %vm58 = vcmp.gt.f32.partialorder %v54, 0.0
    %vm59 = vcmp.gt.f32.partialorder %v57, 0.0
    %v60 = vrcp.pop %v54
    %v61 = vmul.f32 1.0, %v60
    %v62 = vrcp.pop %v57
    %v63 = vmul.f32 1.0, %v62
    %v64 = vsel %vm58, %v61, 0.0
    %v65 = vsel %vm59, %v63, 0.0
    %v66 = vadd.f32 %v52, %v55
    %v67 = vrot.slane %v66, 4
    %v68 = vadd.f32 %v66, %v67
    %v69 = vrot.slane %v68, 2
    %v70 = vadd.f32 %v68, %v69
    %v71 = vrot.slane %v70, 1
    %v72 = vadd.f32 %v70, %v71
    %vm73 = vcmp.gt.f32.partialorder %v72, 0.0
    %v74 = vrcp.pop %v72
    %v75 = vmul.f32 1.0, %v74
    %v76 = vsel %vm73, %v75, 0.0
    %v77 = vmul.f32 %v49, %v64
    %v78 = vmul.f32 %v50, %v65
    %v79 = vmul.f32 %v77, %v76
    %v80 = vmul.f32 %v78, %v76
    %v81 = vld [vmem:[%s0] sm:$0xff]
    %v82 = vld [vmem:[%s0 + $0x8] sm:$0xff]
    %v83 = vld [vmem:[%s2] sm:$0xff]
    %v84 = vld [vmem:[%s3] sm:$0x1]
    %v86 = vsel %vm51, %v81, 0
    %v89 = vsel %vm51, %v82, 0
    %91 = vmatprep.subr.mxu0 0.0
    %92 = vmatpush1.msra.mxu0 %v83
    %93 = vmatprep.subr.mxu0 0.0
    %94 = vmatpush1.msra.mxu0 0.0
    %95 = vmatprep.subr.mxu0 0.0
    %96 = vmatpush1.msra.mxu0 0.0
    %97 = vmatprep.subr.mxu0 0.0
    %98 = vmatpush1.msra.mxu0 0.0
    %99 = vmatprep.subr.mxu0 0.0
    %100 = vmatpush1.msra.mxu0 0.0
    %101 = vmatprep.subr.mxu0 0.0
    %102 = vmatpush1.msra.mxu0 0.0
    %103 = vmatprep.subr.mxu0 0.0
    %104 = vmatpush1.msra.mxu0 0.0
    %105 = vmatprep.subr.mxu0 0.0
    %106 = vmatpush1.msra.mxu0 0.0
    %107 = vmatprep.subr.mxu0 0.0
    %108 = vmatpush1.msra.mxu0 0.0
    %109 = vmatprep.subr.mxu0 0.0
    %110 = vmatpush1.msra.mxu0 0.0
    %111 = vmatprep.subr.mxu0 0.0
    %112 = vmatpush1.msra.mxu0 0.0
    %113 = vmatprep.subr.mxu0 0.0
    %114 = vmatpush1.msra.mxu0 0.0
    %115 = vmatprep.subr.mxu0 0.0
    %116 = vmatpush1.msra.mxu0 0.0
    %117 = vmatprep.subr.mxu0 0.0
    %118 = vmatpush1.msra.mxu0 0.0
    %119 = vmatprep.subr.mxu0 0.0
    %120 = vmatpush1.msra.mxu0 0.0
    %121 = vmatprep.subr.mxu0 0.0
    %122 = vmatpush1.msra.mxu0 0.0
    %123 = vmatprep.subr.mxu0 0.0
    %124 = vmatpush1.msra.mxu0 0.0
    %125 = vmatprep.subr.mxu0 0.0
    %126 = vmatpush1.msra.mxu0 0.0
    %127 = vmatprep.subr.mxu0 0.0
    %128 = vmatpush1.msra.mxu0 0.0
    %129 = vmatprep.subr.mxu0 0.0
    %130 = vmatpush1.msra.mxu0 0.0
    %131 = vmatprep.subr.mxu0 0.0
    %132 = vmatpush1.msra.mxu0 0.0
    %133 = vmatprep.subr.mxu0 0.0
    %134 = vmatpush1.msra.mxu0 0.0
    %135 = vmatprep.subr.mxu0 0.0
    %136 = vmatpush1.msra.mxu0 0.0
    %137 = vmatprep.subr.mxu0 0.0
    %138 = vmatpush1.msra.mxu0 0.0
    %139 = vmatprep.subr.mxu0 0.0
    %140 = vmatpush1.msra.mxu0 0.0
    %141 = vmatprep.subr.mxu0 0.0
    %142 = vmatpush1.msra.mxu0 0.0
    %143 = vmatprep.subr.mxu0 0.0
    %144 = vmatpush1.msra.mxu0 0.0
    %145 = vmatprep.subr.mxu0 0.0
    %146 = vmatpush1.msra.mxu0 0.0
    %147 = vmatprep.subr.mxu0 0.0
    %148 = vmatpush1.msra.mxu0 0.0
    %149 = vmatprep.subr.mxu0 0.0
    %150 = vmatpush1.msra.mxu0 0.0
    %151 = vmatprep.subr.mxu0 0.0
    %152 = vmatpush1.msra.mxu0 0.0
    %153 = vmatprep.subr.mxu0 0.0
    %154 = vmatpush1.msra.mxu0 0.0
    %155 = vmatprep.mubr.f32.mxu0 0.0
    %156 = vmatmul.mubr.f32.gmra.mrb[0].mxu0 %v86
    %v157 = vpop.f32.mrb[0].mxu0
    %v158 = vadd.f32 0.0, %v157
    %v159 = vpop.f32.mrb[0].mxu0
    %160 = vmatprep.mubr.f32.mxu0 0.0
    %161 = vmatmul.mubr.f32.gmra.mrb[0].mxu0 %v89
    %v162 = vpop.f32.mrb[0].mxu0
    %v163 = vadd.f32 0.0, %v162
    %v164 = vpop.f32.mrb[0].mxu0
    %165 = vdwg.mxu0
    %166 = vxpose.xlu0.b32.start [1/16] %v49, 128
    %167 = vxpose.xlu0.b32.cont [2/16] %v50, 128
    %168 = vxpose.xlu0.b32.cont [3/16] 0.0, 128
    %169 = vxpose.xlu0.b32.cont [4/16] 0.0, 128
    %170 = vxpose.xlu0.b32.cont [5/16] 0.0, 128
    %171 = vxpose.xlu0.b32.cont [6/16] 0.0, 128
    %172 = vxpose.xlu0.b32.cont [7/16] 0.0, 128
    %173 = vxpose.xlu0.b32.cont [8/16] 0.0, 128
    %174 = vxpose.xlu0.b32.cont [9/16] 0.0, 128
    %175 = vxpose.xlu0.b32.cont [10/16] 0.0, 128
    %176 = vxpose.xlu0.b32.cont [11/16] 0.0, 128
    %177 = vxpose.xlu0.b32.cont [12/16] 0.0, 128
    %178 = vxpose.xlu0.b32.cont [13/16] 0.0, 128
    %179 = vxpose.xlu0.b32.cont [14/16] 0.0, 128
    %180 = vxpose.xlu0.b32.cont [15/16] 0.0, 128
    %181 = vxpose.xlu0.b32.end [16/16] 0.0, 128
    %v182 = vpop.trf.xlu0
    %v183 = vpop.trf.xlu0
    %v184 = vpop.trf.xlu0
    %v185 = vpop.trf.xlu0
    %v186 = vpop.trf.xlu0
    %v187 = vpop.trf.xlu0
    %v188 = vpop.trf.xlu0
    %v189 = vpop.trf.xlu0
    %v190 = vpop.trf.xlu0
    %v191 = vpop.trf.xlu0
    %v192 = vpop.trf.xlu0
    %v193 = vpop.trf.xlu0
    %v194 = vpop.trf.xlu0
    %v195 = vpop.trf.xlu0
    %v196 = vpop.trf.xlu0
    %v197 = vpop.trf.xlu0
    %vm198 = vcmask 130048
    %v200 = vsel %vm198, %v182, 0
    %202 = vmatprep.subr.mxu0 0.0
    %203 = vmatpush1.msra.mxu0 %v158
    %204 = vmatprep.subr.mxu0 0.0
    %205 = vmatpush1.msra.mxu0 %v163
    %206 = vmatprep.subr.mxu0 0.0
    %207 = vmatpush1.msra.mxu0 0.0
    %208 = vmatprep.subr.mxu0 0.0
    %209 = vmatpush1.msra.mxu0 0.0
    %210 = vmatprep.subr.mxu0 0.0
    %211 = vmatpush1.msra.mxu0 0.0
    %212 = vmatprep.subr.mxu0 0.0
    %213 = vmatpush1.msra.mxu0 0.0
    %214 = vmatprep.subr.mxu0 0.0
    %215 = vmatpush1.msra.mxu0 0.0
    %216 = vmatprep.subr.mxu0 0.0
    %217 = vmatpush1.msra.mxu0 0.0
    %218 = vmatprep.subr.mxu0 0.0
    %219 = vmatpush1.msra.mxu0 0.0
    %220 = vmatprep.subr.mxu0 0.0
    %221 = vmatpush1.msra.mxu0 0.0
    %222 = vmatprep.subr.mxu0 0.0
    %223 = vmatpush1.msra.mxu0 0.0
    %224 = vmatprep.subr.mxu0 0.0
    %225 = vmatpush1.msra.mxu0 0.0
    %226 = vmatprep.subr.mxu0 0.0
    %227 = vmatpush1.msra.mxu0 0.0
    %228 = vmatprep.subr.mxu0 0.0
    %229 = vmatpush1.msra.mxu0 0.0
    %230 = vmatprep.subr.mxu0 0.0
    %231 = vmatpush1.msra.mxu0 0.0
    %232 = vmatprep.subr.mxu0 0.0
    %233 = vmatpush1.msra.mxu0 0.0
    %234 = vmatprep.subr.mxu0 0.0
    %235 = vmatpush1.msra.mxu0 0.0
    %236 = vmatprep.subr.mxu0 0.0
    %237 = vmatpush1.msra.mxu0 0.0
    %238 = vmatprep.subr.mxu0 0.0
    %239 = vmatpush1.msra.mxu0 0.0
    %240 = vmatprep.subr.mxu0 0.0
    %241 = vmatpush1.msra.mxu0 0.0
    %242 = vmatprep.subr.mxu0 0.0
    %243 = vmatpush1.msra.mxu0 0.0
    %244 = vmatprep.subr.mxu0 0.0
    %245 = vmatpush1.msra.mxu0 0.0
    %246 = vmatprep.subr.mxu0 0.0
    %247 = vmatpush1.msra.mxu0 0.0
    %248 = vmatprep.subr.mxu0 0.0
    %249 = vmatpush1.msra.mxu0 0.0
    %250 = vmatprep.subr.mxu0 0.0
    %251 = vmatpush1.msra.mxu0 0.0
    %252 = vmatprep.subr.mxu0 0.0
    %253 = vmatpush1.msra.mxu0 0.0
    %254 = vmatprep.subr.mxu0 0.0
    %255 = vmatpush1.msra.mxu0 0.0
    %256 = vmatprep.subr.mxu0 0.0
    %257 = vmatpush1.msra.mxu0 0.0
    %258 = vmatprep.subr.mxu0 0.0
    %259 = vmatpush1.msra.mxu0 0.0
    %260 = vmatprep.subr.mxu0 0.0
    %261 = vmatpush1.msra.mxu0 0.0
    %262 = vmatprep.subr.mxu0 0.0
    %263 = vmatpush1.msra.mxu0 0.0
    %264 = vmatprep.subr.mxu0 0.0
    %265 = vmatpush1.msra.mxu0 0.0
    %266 = vmatprep.mubr.f32.mxu0 0.0
    %267 = vmatmul.mubr.f32.gmra.mrb[0].mxu0 %v200
    %v268 = vpop.f32.mrb[0].mxu0
    %v269 = vadd.f32 0.0, %v268
    %v270 = vpop.f32.mrb[0].mxu0
    %271 = vdwg.mxu0
    %v273 = vlaneseq
    %v274 = vshrl.u32 %v273, 7
    %v275 = vsub.s32 0, %v274
    %v276 = vrot.slane %v84, %v275
    %v279 = vsel %vm51, %v79, 0
    %v282 = vsel %vm51, %v80, 0
    %284 = vmatprep.subr.mxu0 0.0
    %285 = vmatpush1.msra.mxu0 %v269
    %286 = vmatprep.subr.mxu0 0.0
    %287 = vmatpush1.msra.mxu0 0.0
    %288 = vmatprep.subr.mxu0 0.0
    %289 = vmatpush1.msra.mxu0 0.0
    %290 = vmatprep.subr.mxu0 0.0
    %291 = vmatpush1.msra.mxu0 0.0
    %292 = vmatprep.subr.mxu0 0.0
    %293 = vmatpush1.msra.mxu0 0.0
    %294 = vmatprep.subr.mxu0 0.0
    %295 = vmatpush1.msra.mxu0 0.0
    %296 = vmatprep.subr.mxu0 0.0
    %297 = vmatpush1.msra.mxu0 0.0
    %298 = vmatprep.subr.mxu0 0.0
    %299 = vmatpush1.msra.mxu0 0.0
    %300 = vmatprep.subr.mxu0 0.0
    %301 = vmatpush1.msra.mxu0 0.0
    %302 = vmatprep.subr.mxu0 0.0
    %303 = vmatpush1.msra.mxu0 0.0
    %304 = vmatprep.subr.mxu0 0.0
    %305 = vmatpush1.msra.mxu0 0.0
    %306 = vmatprep.subr.mxu0 0.0
    %307 = vmatpush1.msra.mxu0 0.0
    %308 = vmatprep.subr.mxu0 0.0
    %309 = vmatpush1.msra.mxu0 0.0
    %310 = vmatprep.subr.mxu0 0.0
    %311 = vmatpush1.msra.mxu0 0.0
    %312 = vmatprep.subr.mxu0 0.0
    %313 = vmatpush1.msra.mxu0 0.0
    %314 = vmatprep.subr.mxu0 0.0
    %315 = vmatpush1.msra.mxu0 0.0
    %316 = vmatprep.subr.mxu0 0.0
    %317 = vmatpush1.msra.mxu0 0.0
    %318 = vmatprep.subr.mxu0 0.0
    %319 = vmatpush1.msra.mxu0 0.0
    %320 = vmatprep.subr.mxu0 0.0
    %321 = vmatpush1.msra.mxu0 0.0
    %322 = vmatprep.subr.mxu0 0.0
    %323 = vmatpush1.msra.mxu0 0.0
    %324 = vmatprep.subr.mxu0 0.0
    %325 = vmatpush1.msra.mxu0 0.0
    %326 = vmatprep.subr.mxu0 0.0
    %327 = vmatpush1.msra.mxu0 0.0
    %328 = vmatprep.subr.mxu0 0.0
    %329 = vmatpush1.msra.mxu0 0.0
    %330 = vmatprep.subr.mxu0 0.0
    %331 = vmatpush1.msra.mxu0 0.0
    %332 = vmatprep.subr.mxu0 0.0
    %333 = vmatpush1.msra.mxu0 0.0
    %334 = vmatprep.subr.mxu0 0.0
    %335 = vmatpush1.msra.mxu0 0.0
    %336 = vmatprep.subr.mxu0 0.0
    %337 = vmatpush1.msra.mxu0 0.0
    %338 = vmatprep.subr.mxu0 0.0
    %339 = vmatpush1.msra.mxu0 0.0
    %340 = vmatprep.subr.mxu0 0.0
    %341 = vmatpush1.msra.mxu0 0.0
    %342 = vmatprep.subr.mxu0 0.0
    %343 = vmatpush1.msra.mxu0 0.0
    %344 = vmatprep.subr.mxu0 0.0
    %345 = vmatpush1.msra.mxu0 0.0
    %346 = vmatprep.subr.mxu0 0.0
    %347 = vmatpush1.msra.mxu0 0.0
    %348 = vmatprep.mubr.f32.mxu0 0.0
    %349 = vmatmul.mubr.f32.gmra.mrb[0].mxu0 %v279
    %v350 = vpop.f32.mrb[0].mxu0
    %v351 = vadd.f32 %v276, %v350
    %v352 = vpop.f32.mrb[0].mxu0
    %353 = vmatprep.mubr.f32.mxu0 0.0
    %354 = vmatmul.mubr.f32.gmra.mrb[0].mxu0 %v282
    %v355 = vpop.f32.mrb[0].mxu0
    %v356 = vadd.f32 %v276, %v355
    %v357 = vpop.f32.mrb[0].mxu0
    %358 = vdwg.mxu0
    %v359 = vmax.f32 %v351, 0.0
    %v360 = vmax.f32 %v356, 0.0
    %v361 = vld [vmem:[%s4] sm:$0xff]
    %v362 = vld [vmem:[%s4 + $0x8] sm:$0xff]
    %v363 = vld [vmem:[%s4 + $0x10] sm:$0xff]
    %v364 = vld [vmem:[%s4 + $0x18] sm:$0xff]
    %v365 = vld [vmem:[%s5] sm:$0x1]
    %vm366 = vcmask 261120
    %v368 = vsel %vm366, %v359, 0
    %v371 = vsel %vm366, %v360, 0
    %373 = vmatprep.subr.mxu0 0.0
    %374 = vmatpush1.msra.mxu0 %v361
    %375 = vmatprep.subr.mxu0 0.0
    %376 = vmatpush1.msra.mxu0 %v362
    %377 = vmatprep.subr.mxu0 0.0
    %378 = vmatpush1.msra.mxu0 %v363
    %379 = vmatprep.subr.mxu0 0.0
    %380 = vmatpush1.msra.mxu0 %v364
    %381 = vmatprep.subr.mxu0 0.0
    %382 = vmatpush1.msra.mxu0 0.0
    %383 = vmatprep.subr.mxu0 0.0
    %384 = vmatpush1.msra.mxu0 0.0
    %385 = vmatprep.subr.mxu0 0.0
    %386 = vmatpush1.msra.mxu0 0.0
    %387 = vmatprep.subr.mxu0 0.0
    %388 = vmatpush1.msra.mxu0 0.0
    %389 = vmatprep.subr.mxu0 0.0
    %390 = vmatpush1.msra.mxu0 0.0
    %391 = vmatprep.subr.mxu0 0.0
    %392 = vmatpush1.msra.mxu0 0.0
    %393 = vmatprep.subr.mxu0 0.0
    %394 = vmatpush1.msra.mxu0 0.0
    %395 = vmatprep.subr.mxu0 0.0
    %396 = vmatpush1.msra.mxu0 0.0
    %397 = vmatprep.subr.mxu0 0.0
    %398 = vmatpush1.msra.mxu0 0.0
    %399 = vmatprep.subr.mxu0 0.0
    %400 = vmatpush1.msra.mxu0 0.0
    %401 = vmatprep.subr.mxu0 0.0
    %402 = vmatpush1.msra.mxu0 0.0
    %403 = vmatprep.subr.mxu0 0.0
    %404 = vmatpush1.msra.mxu0 0.0
    %405 = vmatprep.subr.mxu0 0.0
    %406 = vmatpush1.msra.mxu0 0.0
    %407 = vmatprep.subr.mxu0 0.0
    %408 = vmatpush1.msra.mxu0 0.0
    %409 = vmatprep.subr.mxu0 0.0
    %410 = vmatpush1.msra.mxu0 0.0
    %411 = vmatprep.subr.mxu0 0.0
    %412 = vmatpush1.msra.mxu0 0.0
    %413 = vmatprep.subr.mxu0 0.0
    %414 = vmatpush1.msra.mxu0 0.0
    %415 = vmatprep.subr.mxu0 0.0
    %416 = vmatpush1.msra.mxu0 0.0
    %417 = vmatprep.subr.mxu0 0.0
    %418 = vmatpush1.msra.mxu0 0.0
    %419 = vmatprep.subr.mxu0 0.0
    %420 = vmatpush1.msra.mxu0 0.0
    %421 = vmatprep.subr.mxu0 0.0
    %422 = vmatpush1.msra.mxu0 0.0
    %423 = vmatprep.subr.mxu0 0.0
    %424 = vmatpush1.msra.mxu0 0.0
    %425 = vmatprep.subr.mxu0 0.0
    %426 = vmatpush1.msra.mxu0 0.0
    %427 = vmatprep.subr.mxu0 0.0
    %428 = vmatpush1.msra.mxu0 0.0
    %429 = vmatprep.subr.mxu0 0.0
    %430 = vmatpush1.msra.mxu0 0.0
    %431 = vmatprep.subr.mxu0 0.0
    %432 = vmatpush1.msra.mxu0 0.0
    %433 = vmatprep.subr.mxu0 0.0
    %434 = vmatpush1.msra.mxu0 0.0
    %435 = vmatprep.subr.mxu0 0.0
    %436 = vmatpush1.msra.mxu0 0.0
    %437 = vmatprep.mubr.f32.mxu0 0.0
    %438 = vmatmul.mubr.f32.gmra.mrb[0].mxu0 %v368
    %v439 = vpop.f32.mrb[0].mxu0
    %v440 = vadd.f32 0.0, %v439
    %v441 = vpop.f32.mrb[0].mxu0
    %442 = vmatprep.mubr.f32.mxu0 0.0
    %443 = vmatmul.mubr.f32.gmra.mrb[0].mxu0 %v371
    %v444 = vpop.f32.mrb[0].mxu0
    %v445 = vadd.f32 0.0, %v444
    %v446 = vpop.f32.mrb[0].mxu0
    %447 = vdwg.mxu0
    %448 = vmatprep.subr.mxu0 0.0
    %449 = vmatpush1.msra.mxu0 %v440
    %450 = vmatprep.subr.mxu0 0.0
    %451 = vmatpush1.msra.mxu0 %v445
    %452 = vmatprep.subr.mxu0 0.0
    %453 = vmatpush1.msra.mxu0 0.0
    %454 = vmatprep.subr.mxu0 0.0
    %455 = vmatpush1.msra.mxu0 0.0
    %456 = vmatprep.subr.mxu0 0.0
    %457 = vmatpush1.msra.mxu0 0.0
    %458 = vmatprep.subr.mxu0 0.0
    %459 = vmatpush1.msra.mxu0 0.0
    %460 = vmatprep.subr.mxu0 0.0
    %461 = vmatpush1.msra.mxu0 0.0
    %462 = vmatprep.subr.mxu0 0.0
    %463 = vmatpush1.msra.mxu0 0.0
    %464 = vmatprep.subr.mxu0 0.0
    %465 = vmatpush1.msra.mxu0 0.0
    %466 = vmatprep.subr.mxu0 0.0
    %467 = vmatpush1.msra.mxu0 0.0
    %468 = vmatprep.subr.mxu0 0.0
    %469 = vmatpush1.msra.mxu0 0.0
    %470 = vmatprep.subr.mxu0 0.0
    %471 = vmatpush1.msra.mxu0 0.0
    %472 = vmatprep.subr.mxu0 0.0
    %473 = vmatpush1.msra.mxu0 0.0
    %474 = vmatprep.subr.mxu0 0.0
    %475 = vmatpush1.msra.mxu0 0.0
    %476 = vmatprep.subr.mxu0 0.0
    %477 = vmatpush1.msra.mxu0 0.0
    %478 = vmatprep.subr.mxu0 0.0
    %479 = vmatpush1.msra.mxu0 0.0
    %480 = vmatprep.subr.mxu0 0.0
    %481 = vmatpush1.msra.mxu0 0.0
    %482 = vmatprep.subr.mxu0 0.0
    %483 = vmatpush1.msra.mxu0 0.0
    %484 = vmatprep.subr.mxu0 0.0
    %485 = vmatpush1.msra.mxu0 0.0
    %486 = vmatprep.subr.mxu0 0.0
    %487 = vmatpush1.msra.mxu0 0.0
    %488 = vmatprep.subr.mxu0 0.0
    %489 = vmatpush1.msra.mxu0 0.0
    %490 = vmatprep.subr.mxu0 0.0
    %491 = vmatpush1.msra.mxu0 0.0
    %492 = vmatprep.subr.mxu0 0.0
    %493 = vmatpush1.msra.mxu0 0.0
    %494 = vmatprep.subr.mxu0 0.0
    %495 = vmatpush1.msra.mxu0 0.0
    %496 = vmatprep.subr.mxu0 0.0
    %497 = vmatpush1.msra.mxu0 0.0
    %498 = vmatprep.subr.mxu0 0.0
    %499 = vmatpush1.msra.mxu0 0.0
    %500 = vmatprep.subr.mxu0 0.0
    %501 = vmatpush1.msra.mxu0 0.0
    %502 = vmatprep.subr.mxu0 0.0
    %503 = vmatpush1.msra.mxu0 0.0
    %504 = vmatprep.subr.mxu0 0.0
    %505 = vmatpush1.msra.mxu0 0.0
    %506 = vmatprep.subr.mxu0 0.0
    %507 = vmatpush1.msra.mxu0 0.0
    %508 = vmatprep.subr.mxu0 0.0
    %509 = vmatpush1.msra.mxu0 0.0
    %510 = vmatprep.subr.mxu0 0.0
    %511 = vmatpush1.msra.mxu0 0.0
    %512 = vmatprep.mubr.f32.mxu0 0.0
    %513 = vmatmul.mubr.f32.gmra.mrb[0].mxu0 %v200
    %v514 = vpop.f32.mrb[0].mxu0
    %v515 = vadd.f32 0.0, %v514
    %v516 = vpop.f32.mrb[0].mxu0
    %517 = vdwg.mxu0
    %v519 = vlaneseq
    %v520 = vshrl.u32 %v519, 7
    %v521 = vsub.s32 0, %v520
    %v522 = vrot.slane %v365, %v521
    %524 = vmatprep.subr.mxu0 0.0
    %525 = vmatpush1.msra.mxu0 %v515
    %526 = vmatprep.subr.mxu0 0.0
    %527 = vmatpush1.msra.mxu0 0.0
    %528 = vmatprep.subr.mxu0 0.0
    %529 = vmatpush1.msra.mxu0 0.0
    %530 = vmatprep.subr.mxu0 0.0
    %531 = vmatpush1.msra.mxu0 0.0
    %532 = vmatprep.subr.mxu0 0.0
    %533 = vmatpush1.msra.mxu0 0.0
    %534 = vmatprep.subr.mxu0 0.0
    %535 = vmatpush1.msra.mxu0 0.0
    %536 = vmatprep.subr.mxu0 0.0
    %537 = vmatpush1.msra.mxu0 0.0
    %538 = vmatprep.subr.mxu0 0.0
    %539 = vmatpush1.msra.mxu0 0.0
    %540 = vmatprep.subr.mxu0 0.0
    %541 = vmatpush1.msra.mxu0 0.0
    %542 = vmatprep.subr.mxu0 0.0
    %543 = vmatpush1.msra.mxu0 0.0
    %544 = vmatprep.subr.mxu0 0.0
    %545 = vmatpush1.msra.mxu0 0.0
    %546 = vmatprep.subr.mxu0 0.0
    %547 = vmatpush1.msra.mxu0 0.0
    %548 = vmatprep.subr.mxu0 0.0
    %549 = vmatpush1.msra.mxu0 0.0
    %550 = vmatprep.subr.mxu0 0.0
    %551 = vmatpush1.msra.mxu0 0.0
    %552 = vmatprep.subr.mxu0 0.0
    %553 = vmatpush1.msra.mxu0 0.0
    %554 = vmatprep.subr.mxu0 0.0
    %555 = vmatpush1.msra.mxu0 0.0
    %556 = vmatprep.subr.mxu0 0.0
    %557 = vmatpush1.msra.mxu0 0.0
    %558 = vmatprep.subr.mxu0 0.0
    %559 = vmatpush1.msra.mxu0 0.0
    %560 = vmatprep.subr.mxu0 0.0
    %561 = vmatpush1.msra.mxu0 0.0
    %562 = vmatprep.subr.mxu0 0.0
    %563 = vmatpush1.msra.mxu0 0.0
    %564 = vmatprep.subr.mxu0 0.0
    %565 = vmatpush1.msra.mxu0 0.0
    %566 = vmatprep.subr.mxu0 0.0
    %567 = vmatpush1.msra.mxu0 0.0
    %568 = vmatprep.subr.mxu0 0.0
    %569 = vmatpush1.msra.mxu0 0.0
    %570 = vmatprep.subr.mxu0 0.0
    %571 = vmatpush1.msra.mxu0 0.0
    %572 = vmatprep.subr.mxu0 0.0
    %573 = vmatpush1.msra.mxu0 0.0
    %574 = vmatprep.subr.mxu0 0.0
    %575 = vmatpush1.msra.mxu0 0.0
    %576 = vmatprep.subr.mxu0 0.0
    %577 = vmatpush1.msra.mxu0 0.0
    %578 = vmatprep.subr.mxu0 0.0
    %579 = vmatpush1.msra.mxu0 0.0
    %580 = vmatprep.subr.mxu0 0.0
    %581 = vmatpush1.msra.mxu0 0.0
    %582 = vmatprep.subr.mxu0 0.0
    %583 = vmatpush1.msra.mxu0 0.0
    %584 = vmatprep.subr.mxu0 0.0
    %585 = vmatpush1.msra.mxu0 0.0
    %586 = vmatprep.subr.mxu0 0.0
    %587 = vmatpush1.msra.mxu0 0.0
    %588 = vmatprep.mubr.f32.mxu0 0.0
    %589 = vmatmul.mubr.f32.gmra.mrb[0].mxu0 %v279
    %v590 = vpop.f32.mrb[0].mxu0
    %v591 = vadd.f32 %v522, %v590
    %v592 = vpop.f32.mrb[0].mxu0
    %593 = vmatprep.mubr.f32.mxu0 0.0
    %594 = vmatmul.mubr.f32.gmra.mrb[0].mxu0 %v282
    %v595 = vpop.f32.mrb[0].mxu0
    %v596 = vadd.f32 %v522, %v595
    %v597 = vpop.f32.mrb[0].mxu0
    %598 = vdwg.mxu0
    %v599 = vmax.f32 %v591, 0.0
    %v600 = vmax.f32 %v596, 0.0
    %v601 = vld [vmem:[%s6] sm:$0x3]
    %v603 = vsel %vm198, %v601, 0
    %605 = vmatprep.subr.mxu0 0.0
    %606 = vmatpush1.msra.mxu0 %v599
    %607 = vmatprep.subr.mxu0 0.0
    %608 = vmatpush1.msra.mxu0 %v600
    %609 = vmatprep.subr.mxu0 0.0
    %610 = vmatpush1.msra.mxu0 0.0
    %611 = vmatprep.subr.mxu0 0.0
    %612 = vmatpush1.msra.mxu0 0.0
    %613 = vmatprep.subr.mxu0 0.0
    %614 = vmatpush1.msra.mxu0 0.0
    %615 = vmatprep.subr.mxu0 0.0
    %616 = vmatpush1.msra.mxu0 0.0
    %617 = vmatprep.subr.mxu0 0.0
    %618 = vmatpush1.msra.mxu0 0.0
    %619 = vmatprep.subr.mxu0 0.0
    %620 = vmatpush1.msra.mxu0 0.0
    %621 = vmatprep.subr.mxu0 0.0
    %622 = vmatpush1.msra.mxu0 0.0
    %623 = vmatprep.subr.mxu0 0.0
    %624 = vmatpush1.msra.mxu0 0.0
    %625 = vmatprep.subr.mxu0 0.0
    %626 = vmatpush1.msra.mxu0 0.0
    %627 = vmatprep.subr.mxu0 0.0
    %628 = vmatpush1.msra.mxu0 0.0
    %629 = vmatprep.subr.mxu0 0.0
    %630 = vmatpush1.msra.mxu0 0.0
    %631 = vmatprep.subr.mxu0 0.0
    %632 = vmatpush1.msra.mxu0 0.0
    %633 = vmatprep.subr.mxu0 0.0
    %634 = vmatpush1.msra.mxu0 0.0
    %635 = vmatprep.subr.mxu0 0.0
    %636 = vmatpush1.msra.mxu0 0.0
    %637 = vmatprep.subr.mxu0 0.0
    %638 = vmatpush1.msra.mxu0 0.0
    %639 = vmatprep.subr.mxu0 0.0
    %640 = vmatpush1.msra.mxu0 0.0
    %641 = vmatprep.subr.mxu0 0.0
    %642 = vmatpush1.msra.mxu0 0.0
    %643 = vmatprep.subr.mxu0 0.0
    %644 = vmatpush1.msra.mxu0 0.0
    %645 = vmatprep.subr.mxu0 0.0
    %646 = vmatpush1.msra.mxu0 0.0
    %647 = vmatprep.subr.mxu0 0.0
    %648 = vmatpush1.msra.mxu0 0.0
    %649 = vmatprep.subr.mxu0 0.0
    %650 = vmatpush1.msra.mxu0 0.0
    %651 = vmatprep.subr.mxu0 0.0
    %652 = vmatpush1.msra.mxu0 0.0
    %653 = vmatprep.subr.mxu0 0.0
    %654 = vmatpush1.msra.mxu0 0.0
    %655 = vmatprep.subr.mxu0 0.0
    %656 = vmatpush1.msra.mxu0 0.0
    %657 = vmatprep.subr.mxu0 0.0
    %658 = vmatpush1.msra.mxu0 0.0
    %659 = vmatprep.subr.mxu0 0.0
    %660 = vmatpush1.msra.mxu0 0.0
    %661 = vmatprep.subr.mxu0 0.0
    %662 = vmatpush1.msra.mxu0 0.0
    %663 = vmatprep.subr.mxu0 0.0
    %664 = vmatpush1.msra.mxu0 0.0
    %665 = vmatprep.subr.mxu0 0.0
    %666 = vmatpush1.msra.mxu0 0.0
    %667 = vmatprep.subr.mxu0 0.0
    %668 = vmatpush1.msra.mxu0 0.0
    %669 = vmatprep.mubr.f32.mxu0 0.0
    %670 = vmatmul.mubr.f32.gmra.mrb[0].mxu0 %v603
    %v671 = vpop.f32.mrb[0].mxu0
    %v672 = vadd.f32 0.0, %v671
    %v673 = vpop.f32.mrb[0].mxu0
    %674 = vdwg.mxu0
    %v675 = vld [vmem:[#allocation2] sm:$0xff]
    %v676 = vld [vmem:[#allocation2 + $0x8] sm:$0xff]
    %v677 = vld [vmem:[#allocation2 + $0x10] sm:$0xff]
    %v678 = vld [vmem:[#allocation2 + $0x18] sm:$0xff]
    %v679 = vld [vmem:[%s8] sm:$0x1]
    %v681 = vlaneseq
    %v682 = vshrl.u32 %v681, 7
    %v683 = vsub.s32 0, %v682
    %v684 = vrot.slane %v679, %v683
    %v687 = vsel %vm366, %v672, 0
    %689 = vmatprep.subr.mxu0 0.0
    %690 = vmatpush1.msra.mxu0 %v675
    %691 = vmatprep.subr.mxu0 0.0
    %692 = vmatpush1.msra.mxu0 %v676
    %693 = vmatprep.subr.mxu0 0.0
    %694 = vmatpush1.msra.mxu0 %v677
    %695 = vmatprep.subr.mxu0 0.0
    %696 = vmatpush1.msra.mxu0 %v678
    %697 = vmatprep.subr.mxu0 0.0
    %698 = vmatpush1.msra.mxu0 0.0
    %699 = vmatprep.subr.mxu0 0.0
    %700 = vmatpush1.msra.mxu0 0.0
    %701 = vmatprep.subr.mxu0 0.0
    %702 = vmatpush1.msra.mxu0 0.0
    %703 = vmatprep.subr.mxu0 0.0
    %704 = vmatpush1.msra.mxu0 0.0
    %705 = vmatprep.subr.mxu0 0.0
    %706 = vmatpush1.msra.mxu0 0.0
    %707 = vmatprep.subr.mxu0 0.0
    %708 = vmatpush1.msra.mxu0 0.0
    %709 = vmatprep.subr.mxu0 0.0
    %710 = vmatpush1.msra.mxu0 0.0
    %711 = vmatprep.subr.mxu0 0.0
    %712 = vmatpush1.msra.mxu0 0.0
    %713 = vmatprep.subr.mxu0 0.0
    %714 = vmatpush1.msra.mxu0 0.0
    %715 = vmatprep.subr.mxu0 0.0
    %716 = vmatpush1.msra.mxu0 0.0
    %717 = vmatprep.subr.mxu0 0.0
    %718 = vmatpush1.msra.mxu0 0.0
    %719 = vmatprep.subr.mxu0 0.0
    %720 = vmatpush1.msra.mxu0 0.0
    %721 = vmatprep.subr.mxu0 0.0
    %722 = vmatpush1.msra.mxu0 0.0
    %723 = vmatprep.subr.mxu0 0.0
    %724 = vmatpush1.msra.mxu0 0.0
    %725 = vmatprep.subr.mxu0 0.0
    %726 = vmatpush1.msra.mxu0 0.0
    %727 = vmatprep.subr.mxu0 0.0
    %728 = vmatpush1.msra.mxu0 0.0
    %729 = vmatprep.subr.mxu0 0.0
    %730 = vmatpush1.msra.mxu0 0.0
    %731 = vmatprep.subr.mxu0 0.0
    %732 = vmatpush1.msra.mxu0 0.0
    %733 = vmatprep.subr.mxu0 0.0
    %734 = vmatpush1.msra.mxu0 0.0
    %735 = vmatprep.subr.mxu0 0.0
    %736 = vmatpush1.msra.mxu0 0.0
    %737 = vmatprep.subr.mxu0 0.0
    %738 = vmatpush1.msra.mxu0 0.0
    %739 = vmatprep.subr.mxu0 0.0
    %740 = vmatpush1.msra.mxu0 0.0
    %741 = vmatprep.subr.mxu0 0.0
    %742 = vmatpush1.msra.mxu0 0.0
    %743 = vmatprep.subr.mxu0 0.0
    %744 = vmatpush1.msra.mxu0 0.0
    %745 = vmatprep.subr.mxu0 0.0
    %746 = vmatpush1.msra.mxu0 0.0
    %747 = vmatprep.subr.mxu0 0.0
    %748 = vmatpush1.msra.mxu0 0.0
    %749 = vmatprep.subr.mxu0 0.0
    %750 = vmatpush1.msra.mxu0 0.0
    %751 = vmatprep.subr.mxu0 0.0
    %752 = vmatpush1.msra.mxu0 0.0
    %753 = vmatprep.mubr.f32.mxu0 0.0
    %754 = vmatmul.mubr.f32.gmra.mrb[0].mxu0 %v687
    %v755 = vpop.f32.mrb[0].mxu0
    %v756 = vadd.f32 %v684, %v755
    %v757 = vpop.f32.mrb[0].mxu0
    %758 = vdwg.mxu0
    %759 = vst [vmem:[#allocation5] sm:$0x3] %v756
    // Predicated region
    $region42: #{tpu_custom_call.1} parent=1 // pred_check
      _
    $region43: #{tpu_custom_call.1} parent=1 // pred_check_branch
      %761 = sbr.rel (0) target = $region45
    $region44: #{tpu_custom_call.1} parent=1 // pred_region
      %s763 = ssub.s32 32, 32
      %764 = vsyncadd [#allocation4], %s763
      %s766 = sshll.u32 [#allocation5], 4
      %s767 = int_to_ptr.vmem [resolvable:$true] %s766
      %769 = dma.vmem_to_hbm [thread:$0]  %s767, 32, %s9, [#allocation4]
    $region45: #{tpu_custom_call.1} parent=1 // pred_fallthru
      _
    // Predicated region
    $region46: #{tpu_custom_call.1} parent=1 // pred_check
      _
    $region47: #{tpu_custom_call.1} parent=1 // pred_check_branch
      %771 = sbr.rel (0) target = $region49
    $region48: #{tpu_custom_call.1} parent=1 // pred_region
      %772 = dma.done [#allocation4], 32
    $region49: #{tpu_custom_call.1} parent=1 // pred_fallthru
      _
    %773 = vsyncpa [#allocation3], 1
    %774 = vsyncpa [#allocation4], 1

</llo_original>
